<compile_context>
chip_gen: v7x
topology: tpu7x:2x2x1
jax: 0.10.0
libtpu: 0.0.40
codegen_flags: <defaults>
</compile_context>

<pallas_src>
import functools
import numpy as np
import jax
import jax.numpy as jnp
from jax import lax
from jax.experimental import pallas as pl
from jax.experimental.pallas import tpu as pltpu


def _depthsep_kernel(x_ref, dw_ref, b1_ref, pw_ref, b2_ref, o_ref, xpad_ref, *,
                     h, w, cin, band_out, stride):
    # x_ref   : (1, H, W*Cin)         one batch element, W and C folded on lanes
    # dw_ref  : (9, W*Cin)            depthwise taps, BN1 scale folded, W-tiled
    # b1_ref  : (1, W*Cin)            BN1 bias, W-tiled
    # pw_ref  : (W*Cin, Wout*Cout)    block-diagonal pointwise weights, BN2
    #                                 scale + W-stride subsampling folded in
    # b2_ref  : (1, Wout*Cout)        BN2 bias, W-tiled
    # o_ref   : (1, band, Wout*Cout)  one band of output rows, 128-lane dense
    # xpad_ref: (H+2, (W+2)*Cin)      VMEM scratch: zero-padded image (pad=1)
    band = pl.program_id(1)

    # Zero-padded copy of the input tile in VMEM (replaces jnp.pad in HBM).
    xpad_ref[...] = jnp.zeros_like(xpad_ref)
    xpad_ref[pl.ds(1, h), pl.ds(cin, w * cin)] = x_ref[0]

    # First padded input row used by this band of output rows.
    band_in = band_out * stride
    r0 = pl.multiple_of(band * band_in, band_in)

    # Depthwise 3x3: 9 taps, each a direct (optionally row-strided) ref slice of
    # the padded scratch times a per-(tap, channel) weight vector broadcast over
    # the folded W*Cin lane axis.  No full-image value copies.
    acc = jnp.zeros((band_out, w * cin), jnp.float32)
    for kh in range(3):
        for kw in range(3):
            if stride == 1:
                rows = pl.ds(r0 + kh, band_out)
            else:
                rows = pl.ds(r0 + kh, band_out, stride)
            win = xpad_ref[rows, pl.ds(kw * cin, w * cin)]       # (band, W*Cin)
            wk = dw_ref[pl.ds(kh * 3 + kw, 1), :]                # (1,    W*Cin)
            acc = acc + (win * wk).astype(jnp.float32)

    # BN1 bias + ReLU (scale already folded into dw_ref).
    y = jnp.maximum(acc + b1_ref[...].astype(jnp.float32), 0.0)

    # Pointwise 1x1 conv + BN2 scale on the MXU: (band, W*Cin) @ (W*Cin, Wout*Cout).
    z = jnp.dot(y.astype(pw_ref.dtype), pw_ref[...],
                preferred_element_type=jnp.float32)
    z = jnp.maximum(z + b2_ref[...].astype(jnp.float32), 0.0)

    o_ref[0] = z.astype(o_ref.dtype)                             # lane-dense store


def depth_sep_block(x_nchw, dw_w, bn1, pw_w, bn2, *, stride=1, eps=1e-5):
    """x_nchw: (N, Cin, H, W). dw_w: (3, 3, Cin). pw_w: (Cin, Cout).
    bn1/bn2: dicts with gamma, beta, mean, var (eval-mode running stats).
    Returns (N, Cout, Hout, Wout) matching the PyTorch module."""
    n, cin, h, w = x_nchw.shape
    cout = pw_w.shape[1]
    hout = (h + 2 - 3) // stride + 1
    wout = (w + 2 - 3) // stride + 1
    f32 = jnp.float32

    # ---- Fold BatchNorm (eval mode) into the conv weights (folds done in f32). ----
    s1 = bn1["gamma"].astype(f32) * lax.rsqrt(bn1["var"].astype(f32) + eps)
    b1 = bn1["beta"].astype(f32) - bn1["mean"].astype(f32) * s1
    s2 = bn2["gamma"].astype(f32) * lax.rsqrt(bn2["var"].astype(f32) + eps)
    b2 = bn2["beta"].astype(f32) - bn2["mean"].astype(f32) * s2
    dw_f = dw_w.astype(f32) * s1          # (3,3,Cin), per-channel BN1 scale folded
    pw_f = pw_w.astype(f32) * s2          # (Cin,Cout), per-out-channel BN2 scale folded

    # ---- Lane-folded operands (W folded with C onto the lane axis). ----
    # dwt[kh*3+kw, wf*Cin + c] = dw_f[kh, kw, c]
    dwt = jnp.tile(dw_f.reshape(9, 1, cin), (1, w, 1)).reshape(9, w * cin)
    b1t = jnp.tile(b1.reshape(1, 1, cin), (1, w, 1)).reshape(1, w * cin)
    # Block-diagonal pointwise matrix with the W-stride subsampling folded in:
    #   pwt[wf*Cin + c, wo*Cout + co] = pw_f[c, co] if wf == wo*stride else 0
    sel = (jnp.arange(w)[:, None] == stride * jnp.arange(wout)[None, :]).astype(f32)
    pwt = jnp.einsum("fo,cd->fcod", sel, pw_f).reshape(w * cin, wout * cout)
    b2t = jnp.tile(b2.reshape(1, 1, cout), (1, wout, 1)).reshape(1, wout * cout)

    # NCHW -> NHWC -> (N, H, W*Cin): channels fold into lanes with W.
    # TODO(synk): in a full network keep activations in this folded NHWC layout
    # end-to-end so this per-layer transpose disappears.
    x_lanes = jnp.transpose(x_nchw, (0, 2, 3, 1)).reshape(n, h, w * cin)

    # Row-band grid axis: more pipeline steps / megacore work items; the (tiny)
    # input block is the same across bands so it stays resident.
    band_out = 8 if (hout % 8 == 0 and hout > 8) else hout
    grid = (n, hout // band_out)

    kernel = functools.partial(_depthsep_kernel, h=h, w=w, cin=cin,
                               band_out=band_out, stride=stride)

    out_folded = pl.pallas_call(
        kernel,
        out_shape=jax.ShapeDtypeStruct((n, hout, wout * cout), x_nchw.dtype),
        grid_spec=pltpu.PrefetchScalarGridSpec(
            num_scalar_prefetch=0,
            grid=grid,
            in_specs=[
                pl.BlockSpec((1, h, w * cin), lambda i, b: (i, 0, 0)),
                # Constant operands: same block index every step, so they are
                # not re-fetched between consecutive steps. (pl.Buffered(1)
                # would also drop their double buffers; skipped — they are KB-scale.)
                pl.BlockSpec((9, w * cin), lambda i, b: (0, 0)),
                pl.BlockSpec((1, w * cin), lambda i, b: (0, 0)),
                pl.BlockSpec((w * cin, wout * cout), lambda i, b: (0, 0)),
                pl.BlockSpec((1, wout * cout), lambda i, b: (0, 0)),
            ],
            out_specs=pl.BlockSpec((1, band_out, wout * cout),
                                   lambda i, b: (i, b, 0)),
            scratch_shapes=[pltpu.VMEM((h + 2, (w + 2) * cin), x_nchw.dtype)],
        ),
        compiler_params=pltpu.CompilerParams(
            dimension_semantics=("parallel", "parallel"),
            vmem_limit_bytes=32 * 1024 * 1024,
        ),
    )(x_lanes, dwt, b1t, pwt, b2t)

    # (N, Hout, Wout*Cout) -> NHWC (contiguous reshape) -> NCHW (PyTorch convention).
    return jnp.transpose(out_folded.reshape(n, hout, wout, cout), (0, 3, 1, 2))


def _reference(x_nchw, dw_w, bn1, pw_w, bn2, *, stride=1, eps=1e-5):
    """Pure-JAX reference (lax.conv) for correctness checking."""
    cin = x_nchw.shape[1]
    cout = pw_w.shape[1]
    x = jnp.transpose(x_nchw, (0, 2, 3, 1)).astype(jnp.float32)  # NHWC
    dn = lax.conv_dimension_numbers(x.shape, (3, 3, 1, cin), ("NHWC", "HWIO", "NHWC"))
    y = lax.conv_general_dilated(x, dw_w.reshape(3, 3, 1, cin).astype(jnp.float32),
                                 window_strides=(stride, stride),
                                 padding=((1, 1), (1, 1)),
                                 dimension_numbers=dn,
                                 feature_group_count=cin)
    s1 = bn1["gamma"] / jnp.sqrt(bn1["var"] + eps)
    y = jnp.maximum(y * s1 + (bn1["beta"] - bn1["mean"] * s1), 0.0)
    dn2 = lax.conv_dimension_numbers(y.shape, (1, 1, cin, cout), ("NHWC", "HWIO", "NHWC"))
    z = lax.conv_general_dilated(y, pw_w.reshape(1, 1, cin, cout).astype(jnp.float32),
                                 window_strides=(1, 1), padding="VALID",
                                 dimension_numbers=dn2)
    s2 = bn2["gamma"] / jnp.sqrt(bn2["var"] + eps)
    z = jnp.maximum(z * s2 + (bn2["beta"] - bn2["mean"] * s2), 0.0)
    return jnp.transpose(z, (0, 3, 1, 2))


if __name__ == "__main__":
    # Small shapes consistent with the module: batch=2, Cin=4, H=W=16, Cout=8.
    N, CIN, H, W, COUT = 2, 4, 16, 16, 8
    STRIDE = 1

    key = jax.random.PRNGKey(0)
    keys = jax.random.split(key, 8)
    x = jax.random.normal(keys[0], (N, CIN, H, W), jnp.float32)
    dw_w = jax.random.normal(keys[1], (3, 3, CIN), jnp.float32) * 0.2
    pw_w = jax.random.normal(keys[2], (CIN, COUT), jnp.float32) * 0.2
    bn1 = dict(gamma=jax.random.uniform(keys[3], (CIN,), minval=0.5, maxval=1.5),
               beta=jax.random.normal(keys[4], (CIN,)) * 0.1,
               mean=jax.random.normal(keys[5], (CIN,)) * 0.1,
               var=jax.random.uniform(keys[6], (CIN,), minval=0.5, maxval=1.5))
    bn2 = dict(gamma=jax.random.uniform(keys[7], (COUT,), minval=0.5, maxval=1.5),
               beta=jnp.zeros((COUT,)), mean=jnp.zeros((COUT,)),
               var=jnp.ones((COUT,)))

    out = depth_sep_block(x, dw_w, bn1, pw_w, bn2, stride=STRIDE)
    out = jax.block_until_ready(out)

    ref = _reference(x, dw_w, bn1, pw_w, bn2, stride=STRIDE)
    HOUT = (H + 2 - 3) // STRIDE + 1
    WOUT = (W + 2 - 3) // STRIDE + 1
    assert out.shape == (N, COUT, HOUT, WOUT)
    assert np.allclose(np.asarray(out), np.asarray(ref), atol=1e-4, rtol=1e-4)

    print("KERNEL_OK")
</pallas_src>

<mosaic_0001>
module attributes {stable_mosaic.version = 11 : i64} {
  func.func @_depthsep_kernel(%arg0: i32, %arg1: i32, %arg2: memref<1x16x64xf32, #tpu.memory_space<vmem>>, %arg3: memref<9x64xf32, #tpu.memory_space<vmem>>, %arg4: memref<1x64xf32, #tpu.memory_space<vmem>>, %arg5: memref<64x128xf32, #tpu.memory_space<vmem>>, %arg6: memref<1x128xf32, #tpu.memory_space<vmem>>, %arg7: memref<1x8x128xf32, #tpu.memory_space<vmem>>, %arg8: memref<18x72xf32, #tpu.memory_space<vmem>>) attributes {dimension_semantics = [#tpu.dimension_semantics<parallel>, #tpu.dimension_semantics<parallel>], iteration_bounds = array<i64: 2, 2>, scalar_prefetch = 0 : i64, scratch_operands = 1 : i64, tpu.core_type = #tpu.core_type<tc>, window_params = [{transform_indices = @transform_0, window_bounds = array<i64: 1, 16, 64>}, {pipeline_mode = #tpu.pipeline_mode<synchronous>, transform_indices = @transform_1, window_bounds = array<i64: 9, 64>}, {pipeline_mode = #tpu.pipeline_mode<synchronous>, transform_indices = @transform_2, window_bounds = array<i64: 1, 64>}, {pipeline_mode = #tpu.pipeline_mode<synchronous>, transform_indices = @transform_3, window_bounds = array<i64: 64, 128>}, {pipeline_mode = #tpu.pipeline_mode<synchronous>, transform_indices = @transform_4, window_bounds = array<i64: 1, 128>}, {transform_indices = @transform_5, window_bounds = array<i64: 1, 8, 128>}]} {
    %cst = arith.constant 0.000000e+00 : f32
    %0 = vector.broadcast %cst : f32 to vector<18x72xf32>
    %c0 = arith.constant 0 : index
    %c0_0 = arith.constant 0 : index
    %1 = vector.load %arg8[%c0, %c0_0] : memref<18x72xf32, #tpu.memory_space<vmem>>, vector<18x72xf32>
    tpu.vector_store %arg8[%c0, %c0_0], %0 {strides = array<i32>} : memref<18x72xf32, #tpu.memory_space<vmem>>, vector<18x72xf32>,
    %c0_1 = arith.constant 0 : index
    %c0_2 = arith.constant 0 : index
    %c0_3 = arith.constant 0 : index
    %2 = vector.load %arg2[%c0_1, %c0_2, %c0_3] : memref<1x16x64xf32, #tpu.memory_space<vmem>>, vector<1x16x64xf32>
    %3 = vector.shape_cast %2 : vector<1x16x64xf32> to vector<16x64xf32>
    %c1 = arith.constant 1 : index
    %c4 = arith.constant 4 : index
    %4 = vector.load %arg8[%c1, %c4] : memref<18x72xf32, #tpu.memory_space<vmem>>, vector<16x64xf32>
    tpu.vector_store %arg8[%c1, %c4], %3 {strides = array<i32>} : memref<18x72xf32, #tpu.memory_space<vmem>>, vector<16x64xf32>,
    %c8_i32 = arith.constant 8 : i32
    %5 = arith.muli %arg1, %c8_i32 : i32
    %6 = tpu.assume_multiple %5, 8 : i32
    %cst_4 = arith.constant 0.000000e+00 : f32
    %7 = vector.broadcast %cst_4 : f32 to vector<8x64xf32>
    %c0_i32 = arith.constant 0 : i32
    %8 = arith.addi %6, %c0_i32 : i32
    %9 = arith.index_cast %8 : i32 to index
    %c0_5 = arith.constant 0 : index
    %10 = vector.load %arg8[%9, %c0_5] : memref<18x72xf32, #tpu.memory_space<vmem>>, vector<8x64xf32>
    %c0_6 = arith.constant 0 : index
    %c0_7 = arith.constant 0 : index
    %11 = vector.load %arg3[%c0_6, %c0_7] : memref<9x64xf32, #tpu.memory_space<vmem>>, vector<1x64xf32>
    %12 = vector.broadcast %11 : vector<1x64xf32> to vector<8x64xf32>
    %13 = arith.mulf %10, %12 : vector<8x64xf32>
    %14 = arith.addf %7, %13 : vector<8x64xf32>
    %c0_i32_8 = arith.constant 0 : i32
    %15 = arith.addi %6, %c0_i32_8 : i32
    %16 = arith.index_cast %15 : i32 to index
    %c4_9 = arith.constant 4 : index
    %17 = vector.load %arg8[%16, %c4_9] : memref<18x72xf32, #tpu.memory_space<vmem>>, vector<8x64xf32>
    %c1_10 = arith.constant 1 : index
    %c0_11 = arith.constant 0 : index
    %18 = vector.load %arg3[%c1_10, %c0_11] : memref<9x64xf32, #tpu.memory_space<vmem>>, vector<1x64xf32>
    %19 = vector.broadcast %18 : vector<1x64xf32> to vector<8x64xf32>
    %20 = arith.mulf %17, %19 : vector<8x64xf32>
    %21 = arith.addf %14, %20 : vector<8x64xf32>
    %c0_i32_12 = arith.constant 0 : i32
    %22 = arith.addi %6, %c0_i32_12 : i32
    %23 = arith.index_cast %22 : i32 to index
    %c8 = arith.constant 8 : index
    %24 = vector.load %arg8[%23, %c8] : memref<18x72xf32, #tpu.memory_space<vmem>>, vector<8x64xf32>
    %c2 = arith.constant 2 : index
    %c0_13 = arith.constant 0 : index
    %25 = vector.load %arg3[%c2, %c0_13] : memref<9x64xf32, #tpu.memory_space<vmem>>, vector<1x64xf32>
    %26 = vector.broadcast %25 : vector<1x64xf32> to vector<8x64xf32>
    %27 = arith.mulf %24, %26 : vector<8x64xf32>
    %28 = arith.addf %21, %27 : vector<8x64xf32>
    %c1_i32 = arith.constant 1 : i32
    %29 = arith.addi %6, %c1_i32 : i32
    %30 = arith.index_cast %29 : i32 to index
    %c0_14 = arith.constant 0 : index
    %31 = vector.load %arg8[%30, %c0_14] : memref<18x72xf32, #tpu.memory_space<vmem>>, vector<8x64xf32>
    %c3 = arith.constant 3 : index
    %c0_15 = arith.constant 0 : index
    %32 = vector.load %arg3[%c3, %c0_15] : memref<9x64xf32, #tpu.memory_space<vmem>>, vector<1x64xf32>
    %33 = vector.broadcast %32 : vector<1x64xf32> to vector<8x64xf32>
    %34 = arith.mulf %31, %33 : vector<8x64xf32>
    %35 = arith.addf %28, %34 : vector<8x64xf32>
    %c1_i32_16 = arith.constant 1 : i32
    %36 = arith.addi %6, %c1_i32_16 : i32
    %37 = arith.index_cast %36 : i32 to index
    %c4_17 = arith.constant 4 : index
    %38 = vector.load %arg8[%37, %c4_17] : memref<18x72xf32, #tpu.memory_space<vmem>>, vector<8x64xf32>
    %c4_18 = arith.constant 4 : index
    %c0_19 = arith.constant 0 : index
    %39 = vector.load %arg3[%c4_18, %c0_19] : memref<9x64xf32, #tpu.memory_space<vmem>>, vector<1x64xf32>
    %40 = vector.broadcast %39 : vector<1x64xf32> to vector<8x64xf32>
    %41 = arith.mulf %38, %40 : vector<8x64xf32>
    %42 = arith.addf %35, %41 : vector<8x64xf32>
    %c1_i32_20 = arith.constant 1 : i32
    %43 = arith.addi %6, %c1_i32_20 : i32
    %44 = arith.index_cast %43 : i32 to index
    %c8_21 = arith.constant 8 : index
    %45 = vector.load %arg8[%44, %c8_21] : memref<18x72xf32, #tpu.memory_space<vmem>>, vector<8x64xf32>
    %c5 = arith.constant 5 : index
    %c0_22 = arith.constant 0 : index
    %46 = vector.load %arg3[%c5, %c0_22] : memref<9x64xf32, #tpu.memory_space<vmem>>, vector<1x64xf32>
    %47 = vector.broadcast %46 : vector<1x64xf32> to vector<8x64xf32>
    %48 = arith.mulf %45, %47 : vector<8x64xf32>
    %49 = arith.addf %42, %48 : vector<8x64xf32>
    %c2_i32 = arith.constant 2 : i32
    %50 = arith.addi %6, %c2_i32 : i32
    %51 = arith.index_cast %50 : i32 to index
    %c0_23 = arith.constant 0 : index
    %52 = vector.load %arg8[%51, %c0_23] : memref<18x72xf32, #tpu.memory_space<vmem>>, vector<8x64xf32>
    %c6 = arith.constant 6 : index
    %c0_24 = arith.constant 0 : index
    %53 = vector.load %arg3[%c6, %c0_24] : memref<9x64xf32, #tpu.memory_space<vmem>>, vector<1x64xf32>
    %54 = vector.broadcast %53 : vector<1x64xf32> to vector<8x64xf32>
    %55 = arith.mulf %52, %54 : vector<8x64xf32>
    %56 = arith.addf %49, %55 : vector<8x64xf32>
    %c2_i32_25 = arith.constant 2 : i32
    %57 = arith.addi %6, %c2_i32_25 : i32
    %58 = arith.index_cast %57 : i32 to index
    %c4_26 = arith.constant 4 : index
    %59 = vector.load %arg8[%58, %c4_26] : memref<18x72xf32, #tpu.memory_space<vmem>>, vector<8x64xf32>
    %c7 = arith.constant 7 : index
    %c0_27 = arith.constant 0 : index
    %60 = vector.load %arg3[%c7, %c0_27] : memref<9x64xf32, #tpu.memory_space<vmem>>, vector<1x64xf32>
    %61 = vector.broadcast %60 : vector<1x64xf32> to vector<8x64xf32>
    %62 = arith.mulf %59, %61 : vector<8x64xf32>
    %63 = arith.addf %56, %62 : vector<8x64xf32>
    %c2_i32_28 = arith.constant 2 : i32
    %64 = arith.addi %6, %c2_i32_28 : i32
    %65 = arith.index_cast %64 : i32 to index
    %c8_29 = arith.constant 8 : index
    %66 = vector.load %arg8[%65, %c8_29] : memref<18x72xf32, #tpu.memory_space<vmem>>, vector<8x64xf32>
    %c8_30 = arith.constant 8 : index
    %c0_31 = arith.constant 0 : index
    %67 = vector.load %arg3[%c8_30, %c0_31] : memref<9x64xf32, #tpu.memory_space<vmem>>, vector<1x64xf32>
    %68 = vector.broadcast %67 : vector<1x64xf32> to vector<8x64xf32>
    %69 = arith.mulf %66, %68 : vector<8x64xf32>
    %70 = arith.addf %63, %69 : vector<8x64xf32>
    %c0_32 = arith.constant 0 : index
    %c0_33 = arith.constant 0 : index
    %71 = vector.load %arg4[%c0_32, %c0_33] : memref<1x64xf32, #tpu.memory_space<vmem>>, vector<1x64xf32>
    %72 = vector.broadcast %71 : vector<1x64xf32> to vector<8x64xf32>
    %73 = arith.addf %70, %72 : vector<8x64xf32>
    %cst_34 = arith.constant 0.000000e+00 : f32
    %74 = vector.broadcast %cst_34 : f32 to vector<8x64xf32>
    %75 = arith.maximumf %73, %74 : vector<8x64xf32>
    %c0_35 = arith.constant 0 : index
    %c0_36 = arith.constant 0 : index
    %76 = vector.load %arg5[%c0_35, %c0_36] : memref<64x128xf32, #tpu.memory_space<vmem>>, vector<64x128xf32>
    %cst_37 = arith.constant dense<0.000000e+00> : vector<8x128xf32>
    %77 = tpu.matmul %75, %76, %cst_37 {dimension_numbers = #tpu.dot_dimension_numbers<[1], [0], [0], [1], [0, 0, 1, 1], [], []>} : vector<8x64xf32>, vector<64x128xf32>, vector<8x128xf32> -> vector<8x128xf32>
    %c0_38 = arith.constant 0 : index
    %c0_39 = arith.constant 0 : index
    %78 = vector.load %arg6[%c0_38, %c0_39] : memref<1x128xf32, #tpu.memory_space<vmem>>, vector<1x128xf32>
    %79 = vector.broadcast %78 : vector<1x128xf32> to vector<8x128xf32>
    %80 = arith.addf %77, %79 : vector<8x128xf32>
    %cst_40 = arith.constant 0.000000e+00 : f32
    %81 = vector.broadcast %cst_40 : f32 to vector<8x128xf32>
    %82 = arith.maximumf %80, %81 : vector<8x128xf32>
    %c0_41 = arith.constant 0 : index
    %c0_42 = arith.constant 0 : index
    %c0_43 = arith.constant 0 : index
    %83 = vector.load %arg7[%c0_41, %c0_42, %c0_43] : memref<1x8x128xf32, #tpu.memory_space<vmem>>, vector<1x8x128xf32>
    %84 = vector.shape_cast %83 : vector<1x8x128xf32> to vector<8x128xf32>
    %85 = vector.shape_cast %82 : vector<8x128xf32> to vector<1x8x128xf32>
    tpu.vector_store %arg7[%c0_41, %c0_42, %c0_43], %85 {strides = array<i32>} : memref<1x8x128xf32, #tpu.memory_space<vmem>>, vector<1x8x128xf32>,
    return
  }
  func.func @transform_0(%arg0: i32, %arg1: i32) -> (i32, i32, i32) {
    %c0_i32 = arith.constant 0 : i32
    %c0_i32_0 = arith.constant 0 : i32
    %c0_i32_1 = arith.constant 0 : i32
    return %arg0, %c0_i32, %c0_i32_0 : i32, i32, i32
  }
  func.func @transform_1(%arg0: i32, %arg1: i32) -> (i32, i32) {
    %c0_i32 = arith.constant 0 : i32
    %c0_i32_0 = arith.constant 0 : i32
    %c0_i32_1 = arith.constant 0 : i32
    return %c0_i32, %c0_i32_0 : i32, i32
  }
  func.func @transform_2(%arg0: i32, %arg1: i32) -> (i32, i32) {
    %c0_i32 = arith.constant 0 : i32
    %c0_i32_0 = arith.constant 0 : i32
    %c0_i32_1 = arith.constant 0 : i32
    return %c0_i32, %c0_i32_0 : i32, i32
  }
  func.func @transform_3(%arg0: i32, %arg1: i32) -> (i32, i32) {
    %c0_i32 = arith.constant 0 : i32
    %c0_i32_0 = arith.constant 0 : i32
    %c0_i32_1 = arith.constant 0 : i32
    return %c0_i32, %c0_i32_0 : i32, i32
  }
  func.func @transform_4(%arg0: i32, %arg1: i32) -> (i32, i32) {
    %c0_i32 = arith.constant 0 : i32
    %c0_i32_0 = arith.constant 0 : i32
    %c0_i32_1 = arith.constant 0 : i32
    return %c0_i32, %c0_i32_0 : i32, i32
  }
  func.func @transform_5(%arg0: i32, %arg1: i32) -> (i32, i32, i32) {
    %c0_i32 = arith.constant 0 : i32
    %c0_i32_0 = arith.constant 0 : i32
    return %arg0, %arg1, %c0_i32 : i32, i32, i32
  }
}

</mosaic_0001>

<llo_original>
// kernel: tpu_custom_call.1
$region0: #{tpu_custom_call.1}
  #allocation0 [shape = 'u32[]', space=smem, size = 0x4, offset = 0x4, fixed_abs, tag = 'smem constant byte address 0x4 - core index']
  #allocation1 [shape = 'u32[144,128]{1,0:T(1,128)}', space=vmem, size = 0x12000, scoped, tag = 'internal scratch']
  #allocation2 [shape = 'f32[18,72]{1,0:T(8,128)}', space=vmem, size = 0x3000, scoped, tag = 'scratch operand']
  %s0 = inlined_call_operand.hbm [shape: f32[2,16,64], index: 0, kind: input, shape index: {}]
  %s1 = inlined_call_operand.hbm [shape: f32[9,64], index: 1, kind: input, shape index: {}]
  %s2 = inlined_call_operand.vmem [shape: f32[1,64], index: 2, kind: input, shape index: {}]
  %s3 = inlined_call_operand.hbm [shape: f32[64,128], index: 3, kind: input, shape index: {}]
  %s4 = inlined_call_operand.vmem [shape: f32[1,128], index: 4, kind: input, shape index: {}]
  %s5 = inlined_call_operand.hbm [shape: f32[2,16,128], index: 5, kind: output, shape index: {}]
  %s6 = sld [smem:[#allocation0]]
  $region65: #{tpu_custom_call.1} parent=0
    _
  %s8 = ssub.s32 1, %s6
  %s9 = scalar_select 0, %s8, %s6
  $region1: #{tpu_custom_call.1} parent=0
    #allocation3 [shape = 'u8[16384]{0}', space=vmem, size = 0x4000, scoped, tag = 'input window, operand 0']
    #allocation4 [shape = 's32[2]{0}', space=sflag, size = 0x8, scoped, tag = 'scoped memory for tpu_custom_call.1']
    #allocation5 [shape = 's32[2]{0}', space=sflag, size = 0x8, scoped, tag = 'scoped memory for tpu_custom_call.1']
    #allocation6 [shape = 'u8[8192]{0}', space=vmem, size = 0x2000, scoped, tag = 'input window, operand 1, single buffered']
    #allocation7 [shape = 's32[1]{0}', space=sflag, size = 0x4, scoped, tag = 'scoped memory for tpu_custom_call.1']
    #allocation8 [shape = 'u8[32768]{0}', space=vmem, size = 0x8000, scoped, tag = 'input window, operand 3, single buffered']
    #allocation9 [shape = 'u8[8192]{0}', space=vmem, size = 0x2000, scoped, tag = 'output window, operand 0']
    %10 = vsyncpa [#allocation4], 0
    %s11 = scalar_lea.sflag [#allocation4], 1
    %12 = vsyncpa %s11, 0
    %13 = vsyncpa [#allocation7], 0
    %14 = vsyncpa [#allocation5], 0
    %s15 = scalar_lea.sflag [#allocation5], 1
    %16 = vsyncpa %s15, 0
    loop: start=0, step=1, limit=6
    $region2: #{tpu_custom_call.1} parent=1 // loop_pre_header
      _
    $region3: #{tpu_custom_call.1} parent=1 // loop_header
      %s18 = sphi 0, %s22
      %p19 = scmp.ge.s32.totalorder %s18, 6
      %s25 = sphi 0, %s37
      %s26 = sphi 0, %s33
      %s27 = sphi 0, %s25
      %s28 = sphi 0, %s26
      %s29 = sphi 0, %s27
      %s30 = sphi 0, %s28
      %s40 = sphi 0, %s42
      %s43 = sphi 0, %s40
      %s44 = sphi 0, %s43
      %s60 = sphi 0, %s44
      %s64 = sphi 0, %s64
      %s66 = sphi 0, %s64
      %s67 = sphi 0, %s66
      %s81 = sphi 0, %s67
      %s85 = sphi 0, %s85
      %s87 = sphi 0, %s85
      %s88 = sphi 0, %s87
      %s102 = sphi 0, %s88
      %s106 = sphi 0, %s106
      %s108 = sphi 0, %s106
      %s109 = sphi 0, %s108
      %s123 = sphi 0, %s109
      %s127 = sphi 0, %s127
      %s129 = sphi 0, %s127
      %s130 = sphi 0, %s129
      %s144 = sphi 0, %s130
      %s152 = sphi 0, %s154
      %s155 = sphi 0, %s152
      %s156 = sphi 0, %s155
      %s172 = sphi 0, %s156
    $region4: #{tpu_custom_call.1} parent=1 // loop_header_branch
      %21 = sbr.rel (%p19) target = $region8
    $region5: #{tpu_custom_call.1} parent=1 // loop_body
      %s23 = ssub.s32 %s18, 1
      %s24 = ssub.s32 %s18, 2
      %s31 = sadd.s32 1, %s26
      %p32 = scmp.ge.s32.totalorder %s31, 2
      %s33 = scalar_select %p32, 0, %s31
      %s34 = sadd.s32 1, %s25
      %s35 = scalar_select %p32, %s34, %s25
      %p36 = scmp.ge.s32.totalorder %s35, 2
      %s37 = scalar_select %p36, 0, %s35
      %s38 = ssub.s32 %s25, %s37
      %p39 = scmp.eq.s32.totalorder %s38, 0
      %s41 = sadd.s32 %s40, 1
      %s42 = scalar_select %p39, %s40, %s41
      %p45 = pneg %p39
      %p46 = scmp.eq.s32.totalorder %s18, 3
      %p47 = por %p45, %p46
      %p48 = scmp.ne.s32.totalorder %s40, %s43
      %p49 = scmp.eq.s32.totalorder %s18, 0
      %p50 = por %p48, %p49
      %p51 = scmp.ne.s32.totalorder %s40, %s43
      %p52 = scmp.eq.s32.totalorder %s23, 3
      %p53 = por %p51, %p52
      %p54 = scmp.ne.s32.totalorder %s43, %s44
      %p55 = scmp.eq.s32.totalorder %s23, 0
      %p56 = por %p54, %p55
      %p57 = scmp.ne.s32.totalorder %s43, %s44
      %p58 = scmp.eq.s32.totalorder %s24, 3
      %p59 = por %p57, %p58
      %p61 = scmp.ne.s32.totalorder %s44, %s60
      %p62 = scmp.eq.s32.totalorder %s24, 0
      %p63 = por %p61, %p62
      %s65 = sadd.s32 %s64, 1
      %p68 = scmp.eq.s32.totalorder %s18, 3
      %p69 = scmp.ne.s32.totalorder %s64, %s66
      %p70 = scmp.eq.s32.totalorder %s18, 0
      %p71 = por %p69, %p70
      %p72 = scmp.ne.s32.totalorder %s64, %s66
      %p73 = scmp.eq.s32.totalorder %s23, 3
      %p74 = por %p72, %p73
      %p75 = scmp.ne.s32.totalorder %s66, %s67
      %p76 = scmp.eq.s32.totalorder %s23, 0
      %p77 = por %p75, %p76
      %p78 = scmp.ne.s32.totalorder %s66, %s67
      %p79 = scmp.eq.s32.totalorder %s24, 3
      %p80 = por %p78, %p79
      %p82 = scmp.ne.s32.totalorder %s67, %s81
      %p83 = scmp.eq.s32.totalorder %s24, 0
      %p84 = por %p82, %p83
      %s86 = sadd.s32 %s85, 1
      %p89 = scmp.eq.s32.totalorder %s18, 3
      %p90 = scmp.ne.s32.totalorder %s85, %s87
      %p91 = scmp.eq.s32.totalorder %s18, 0
      %p92 = por %p90, %p91
      %p93 = scmp.ne.s32.totalorder %s85, %s87
      %p94 = scmp.eq.s32.totalorder %s23, 3
      %p95 = por %p93, %p94
      %p96 = scmp.ne.s32.totalorder %s87, %s88
      %p97 = scmp.eq.s32.totalorder %s23, 0
      %p98 = por %p96, %p97
      %p99 = scmp.ne.s32.totalorder %s87, %s88
      %p100 = scmp.eq.s32.totalorder %s24, 3
      %p101 = por %p99, %p100
      %p103 = scmp.ne.s32.totalorder %s88, %s102
      %p104 = scmp.eq.s32.totalorder %s24, 0
      %p105 = por %p103, %p104
      %s107 = sadd.s32 %s106, 1
      %p110 = scmp.eq.s32.totalorder %s18, 3
      %p111 = scmp.ne.s32.totalorder %s106, %s108
      %p112 = scmp.eq.s32.totalorder %s18, 0
      %p113 = por %p111, %p112
      %p114 = scmp.ne.s32.totalorder %s106, %s108
      %p115 = scmp.eq.s32.totalorder %s23, 3
      %p116 = por %p114, %p115
      %p117 = scmp.ne.s32.totalorder %s108, %s109
      %p118 = scmp.eq.s32.totalorder %s23, 0
      %p119 = por %p117, %p118
      %p120 = scmp.ne.s32.totalorder %s108, %s109
      %p121 = scmp.eq.s32.totalorder %s24, 3
      %p122 = por %p120, %p121
      %p124 = scmp.ne.s32.totalorder %s109, %s123
      %p125 = scmp.eq.s32.totalorder %s24, 0
      %p126 = por %p124, %p125
      %s128 = sadd.s32 %s127, 1
      %p131 = scmp.eq.s32.totalorder %s18, 3
      %p132 = scmp.ne.s32.totalorder %s127, %s129
      %p133 = scmp.eq.s32.totalorder %s18, 0
      %p134 = por %p132, %p133
      %p135 = scmp.ne.s32.totalorder %s127, %s129
      %p136 = scmp.eq.s32.totalorder %s23, 3
      %p137 = por %p135, %p136
      %p138 = scmp.ne.s32.totalorder %s129, %s130
      %p139 = scmp.eq.s32.totalorder %s23, 0
      %p140 = por %p138, %p139
      %p141 = scmp.ne.s32.totalorder %s129, %s130
      %p142 = scmp.eq.s32.totalorder %s24, 3
      %p143 = por %p141, %p142
      %p145 = scmp.ne.s32.totalorder %s130, %s144
      %p146 = scmp.eq.s32.totalorder %s24, 0
      %p147 = por %p145, %p146
      %s148 = ssub.s32 %s25, %s37
      %s149 = ssub.s32 %s26, %s33
      %s150 = sor.u32 %s148, %s149
      %p151 = scmp.eq.s32.totalorder %s150, 0
      %s153 = sadd.s32 %s152, 1
      %s154 = scalar_select %p151, %s152, %s153
      %p157 = pneg %p151
      %p158 = scmp.eq.s32.totalorder %s18, 3
      %p159 = por %p157, %p158
      %p160 = scmp.ne.s32.totalorder %s152, %s155
      %p161 = scmp.eq.s32.totalorder %s18, 0
      %p162 = por %p160, %p161
      %p163 = scmp.ne.s32.totalorder %s152, %s155
      %p164 = scmp.eq.s32.totalorder %s23, 3
      %p165 = por %p163, %p164
      %p166 = scmp.ne.s32.totalorder %s155, %s156
      %p167 = scmp.eq.s32.totalorder %s23, 0
      %p168 = por %p166, %p167
      %p169 = scmp.ne.s32.totalorder %s155, %s156
      %p170 = scmp.eq.s32.totalorder %s24, 3
      %p171 = por %p169, %p170
      %p173 = scmp.ne.s32.totalorder %s156, %s172
      %p174 = scmp.eq.s32.totalorder %s24, 0
      %p175 = por %p173, %p174
      %p176 = scmp.le.s32.totalorder 1, %s18
      %p177 = scmp.lt.s32.totalorder %s18, 5
      %p178 = pnand %p176, %p177
      %p179 = pneg %p178
      // Predicated region
      $region9: #{tpu_custom_call.1} parent=5 // pred_check
        _
      $region10: #{tpu_custom_call.1} parent=5 // pred_check_branch
        %181 = sbr.rel (%p178) target = $region12
      $region11: #{tpu_custom_call.1} parent=5 // pred_region
        %s182 = ssub.s32 %s18, 1
        // Predicated region
        $region13: #{tpu_custom_call.1} parent=11 // pred_check
          %p183 = pneg %p77
        $region14: #{tpu_custom_call.1} parent=11 // pred_check_branch
          %185 = sbr.rel (%p183) target = $region16
        $region15: #{tpu_custom_call.1} parent=11 // pred_region
          %s187 = ssub.s32 256, 256
          %188 = vsyncadd [#allocation7], %s187
          %s189 = sshll.u32 [#allocation6], 4
          %s190 = int_to_ptr.vmem [resolvable:$true] %s189
          %195 = dma.hbm_to_vmem [thread:$0]  %s1, 256, %s190, [#allocation7], 128, 128, 8
        $region16: #{tpu_custom_call.1} parent=11 // pred_fallthru
          _
        // Predicated region
        $region17: #{tpu_custom_call.1} parent=11 // pred_check
          %p196 = pneg %p98
        $region18: #{tpu_custom_call.1} parent=11 // pred_check_branch
          %198 = sbr.rel (%p196) target = $region20
        $region19: #{tpu_custom_call.1} parent=11 // pred_region
          _
        $region20: #{tpu_custom_call.1} parent=11 // pred_fallthru
          _
        // Predicated region
        $region21: #{tpu_custom_call.1} parent=11 // pred_check
          %p199 = pneg %p119
        $region22: #{tpu_custom_call.1} parent=11 // pred_check_branch
          %201 = sbr.rel (%p199) target = $region24
        $region23: #{tpu_custom_call.1} parent=11 // pred_region
          %s203 = ssub.s32 1024, 1024
          %204 = vsyncadd [#allocation7], %s203
          %s205 = sshll.u32 [#allocation8], 4
          %s206 = int_to_ptr.vmem [resolvable:$true] %s205
          %211 = dma.hbm_to_vmem [thread:$0]  %s3, 1024, %s206, [#allocation7], 128, 128, 8
        $region24: #{tpu_custom_call.1} parent=11 // pred_fallthru
          _
        // Predicated region
        $region25: #{tpu_custom_call.1} parent=11 // pred_check
          %p212 = pneg %p140
        $region26: #{tpu_custom_call.1} parent=11 // pred_check_branch
          %214 = sbr.rel (%p212) target = $region28
        $region27: #{tpu_custom_call.1} parent=11 // pred_region
          _
        $region28: #{tpu_custom_call.1} parent=11 // pred_fallthru
          _
      $region12: #{tpu_custom_call.1} parent=5 // pred_fallthru
        _
      %p215 = scmp.lt.s32.totalorder %s18, 4
      // Predicated region
      $region29: #{tpu_custom_call.1} parent=5 // pred_check
        %p216 = pneg %p215
      $region30: #{tpu_custom_call.1} parent=5 // pred_check_branch
        %218 = sbr.rel (%p216) target = $region32
      $region31: #{tpu_custom_call.1} parent=5 // pred_region
        // Predicated region
        $region33: #{tpu_custom_call.1} parent=31 // pred_check
          %p219 = pneg %p50
        $region34: #{tpu_custom_call.1} parent=31 // pred_check_branch
          %221 = sbr.rel (%p219) target = $region36
        $region35: #{tpu_custom_call.1} parent=31 // pred_region
          %s222 = sand.u32 %s40, 1
          %s223 = scalar_lea.sflag [#allocation4], %s222
          %s224 = sand.u32 %s40, 1
          %s225 = smul.addr %s224, 16
          %s226 = scalar_lea.vmem [#allocation3], %s225
          %s228 = ssub.s32 256, 256
          %229 = vsyncadd %s223, %s228
          %s230 = smul.addr %s25, 2
          %s231 = smul.addr %s230, 128
          %s232 = scalar_lea.hbm %s0, %s231
          %s233 = sshll.u32 %s226, 4
          %s234 = int_to_ptr.vmem [resolvable:$true] %s233
          %239 = dma.hbm_to_vmem [thread:$0]  %s232, 256, %s234, %s223, 128, 128, 8
        $region36: #{tpu_custom_call.1} parent=31 // pred_fallthru
          _
      $region32: #{tpu_custom_call.1} parent=5 // pred_fallthru
        _
      %p240 = scmp.le.s32.totalorder 1, %s18
      %p241 = scmp.lt.s32.totalorder %s18, 5
      %p242 = pnand %p240, %p241
      %p243 = pneg %p242
      // Predicated region
      $region37: #{tpu_custom_call.1} parent=5 // pred_check
        _
      $region38: #{tpu_custom_call.1} parent=5 // pred_check_branch
        %245 = sbr.rel (%p242) target = $region40
      $region39: #{tpu_custom_call.1} parent=5 // pred_region
        %s246 = ssub.s32 %s18, 1
        %s247 = sand.u32 %s43, 1
        %s248 = scalar_lea.sflag [#allocation4], %s247
        %s249 = sand.u32 %s43, 1
        %s250 = smul.addr %s249, 16
        %s251 = scalar_lea.vmem [#allocation3], %s250
        // Predicated region
        $region41: #{tpu_custom_call.1} parent=39 // pred_check
          %p252 = pneg %p56
        $region42: #{tpu_custom_call.1} parent=39 // pred_check_branch
          %254 = sbr.rel (%p252) target = $region44
        $region43: #{tpu_custom_call.1} parent=39 // pred_region
          %255 = dma.done %s248, 256
        $region44: #{tpu_custom_call.1} parent=39 // pred_fallthru
          _
        // Predicated region
        $region45: #{tpu_custom_call.1} parent=39 // pred_check
          %p256 = pneg %p77
        $region46: #{tpu_custom_call.1} parent=39 // pred_check_branch
          %258 = sbr.rel (%p256) target = $region48
        $region47: #{tpu_custom_call.1} parent=39 // pred_region
          %259 = dma.done [#allocation7], 256
        $region48: #{tpu_custom_call.1} parent=39 // pred_fallthru
          _
        // Predicated region
        $region49: #{tpu_custom_call.1} parent=39 // pred_check
          %p260 = pneg %p119
        $region50: #{tpu_custom_call.1} parent=39 // pred_check_branch
          %262 = sbr.rel (%p260) target = $region52
        $region51: #{tpu_custom_call.1} parent=39 // pred_region
          %263 = dma.done [#allocation7], 1024
        $region52: #{tpu_custom_call.1} parent=39 // pred_fallthru
          _
        %s264 = sand.u32 %s43, 1
        %s265 = scalar_lea.sflag [#allocation4], %s264
        %s266 = sand.u32 %s43, 1
        %s267 = smul.addr %s266, 16
        %s268 = scalar_lea.vmem [#allocation3], %s267
        %p269 = pneg %p56
        %p270 = pneg %p53
        %p271 = pneg %p77
        %p272 = pneg %p74
        %p273 = pneg %p98
        %p274 = pneg %p95
        %p275 = pneg %p119
        %p276 = pneg %p116
        %p277 = pneg %p140
        %p278 = pneg %p137
        %p279 = pneg %p168
        %p280 = pneg %p165
        %s281 = sand.u32 %s155, 1
        %s282 = scalar_lea.sflag [#allocation5], %s281
        %s283 = sand.u32 %s155, 1
        %s284 = smul.addr %s283, 8
        %s285 = scalar_lea.vmem [#allocation9], %s284
        %vm286 = vcmask 588800
        %287 = vst.msk [vmem:[#allocation2] sm:$0xff] %vm286, 0.0
        %288 = vst.msk [vmem:[#allocation2 + $0x8] sm:$0xff] %vm286, 0.0
        %vm289 = vcmask 582656
        %290 = vst.msk [vmem:[#allocation2 + $0x10] sm:$0x3] %vm289, 0.0
        %v291 = vld [vmem:[%s251] sm:$0xff]
        %v292 = vld [vmem:[%s251 + $0x8] sm:$0xff]
        %295 = vrot.lane.b32.xlu0 %v291, 4
        %v296 = vpop.permute.xlu0 %295
        %297 = vrot.lane.b32.xlu0 %v292, 4
        %v298 = vpop.permute.xlu0 %297
        %vm301 = vcmask 556064
        %302 = vst.msk [vmem:[#allocation2 + $0x1] sm:$0xff] %vm301, %v296
        %303 = vst.msk [vmem:[#allocation2 + $0x9] sm:$0xff] %vm301, %v298
        %s304 = smul.u32 %s28, 8
        %s305 = scalar_lea.vmem [#allocation2], %s304
        %v306 = vld [vmem:[%s305] sm:$0xff]
        %v307 = vld [vmem:[#allocation6] sm:$0x1]
        %v308 = vlaneseq
        %v309 = vshrl.u32 %v308, 7
        %v310 = vsub.s32 0, %v309
        %v311 = vrot.slane %v307, %v310
        %v312 = vmul.f32 %v306, %v311
        %v313 = vadd.f32 %v312, 0.0
        %v314 = vld [vmem:[#allocation6 + $0x1] sm:$0x1]
        %v315 = vlaneseq
        %v316 = vshrl.u32 %v315, 7
        %v317 = vsub.s32 0, %v316
        %v318 = vrot.slane %v314, %v317
        %320 = vrot.lane.b32.xlu0 %v318, 4
        %v321 = vpop.permute.xlu0 %320
        %v323 = vmul.f32 %v306, %v321
        %325 = vrot.lane.b32.xlu0 %v323, 124
        %v326 = vpop.permute.xlu0 %325
        %v328 = vadd.f32 %v313, %v326
        %v329 = vld [vmem:[#allocation6 + $0x2] sm:$0x1]
        %v330 = vlaneseq
        %v331 = vshrl.u32 %v330, 7
        %v332 = vsub.s32 0, %v331
        %v333 = vrot.slane %v329, %v332
        %335 = vrot.lane.b32.xlu0 %v333, 8
        %v336 = vpop.permute.xlu0 %335
        %v338 = vmul.f32 %v306, %v336
        %340 = vrot.lane.b32.xlu0 %v338, 120
        %v341 = vpop.permute.xlu0 %340
        %v343 = vadd.f32 %v328, %v341
        %s344 = sadd.s32 %s304, 1
        %s345 = scalar_lea.vmem [#allocation2], %s344
        %v346 = vld [vmem:[%s345] sm:$0xff]
        %v347 = vld [vmem:[#allocation6 + $0x3] sm:$0x1]
        %v348 = vlaneseq
        %v349 = vshrl.u32 %v348, 7
        %v350 = vsub.s32 0, %v349
        %v351 = vrot.slane %v347, %v350
        %v352 = vmul.f32 %v346, %v351
        %v353 = vadd.f32 %v343, %v352
        %v354 = vld [vmem:[#allocation6 + $0x4] sm:$0x1]
        %v355 = vlaneseq
        %v356 = vshrl.u32 %v355, 7
        %v357 = vsub.s32 0, %v356
        %v358 = vrot.slane %v354, %v357
        %360 = vrot.lane.b32.xlu0 %v358, 4
        %v361 = vpop.permute.xlu0 %360
        %v363 = vmul.f32 %v346, %v361
        %365 = vrot.lane.b32.xlu0 %v363, 124
        %v366 = vpop.permute.xlu0 %365
        %v368 = vadd.f32 %v353, %v366
        %v369 = vld [vmem:[#allocation6 + $0x5] sm:$0x1]
        %v370 = vlaneseq
        %v371 = vshrl.u32 %v370, 7
        %v372 = vsub.s32 0, %v371
        %v373 = vrot.slane %v369, %v372
        %375 = vrot.lane.b32.xlu0 %v373, 8
        %v376 = vpop.permute.xlu0 %375
        %v378 = vmul.f32 %v346, %v376
        %380 = vrot.lane.b32.xlu0 %v378, 120
        %v381 = vpop.permute.xlu0 %380
        %v383 = vadd.f32 %v368, %v381
        %s384 = sadd.s32 %s304, 2
        %s385 = scalar_lea.vmem [#allocation2], %s384
        %v386 = vld [vmem:[%s385] sm:$0xff]
        %v387 = vld [vmem:[#allocation6 + $0x6] sm:$0x1]
        %v388 = vlaneseq
        %v389 = vshrl.u32 %v388, 7
        %v390 = vsub.s32 0, %v389
        %v391 = vrot.slane %v387, %v390
        %v392 = vmul.f32 %v386, %v391
        %v393 = vadd.f32 %v383, %v392
        %v394 = vld [vmem:[#allocation6 + $0x7] sm:$0x1]
        %v395 = vlaneseq
        %v396 = vshrl.u32 %v395, 7
        %v397 = vsub.s32 0, %v396
        %v398 = vrot.slane %v394, %v397
        %400 = vrot.lane.b32.xlu0 %v398, 4
        %v401 = vpop.permute.xlu0 %400
        %v403 = vmul.f32 %v386, %v401
        %405 = vrot.lane.b32.xlu0 %v403, 124
        %v406 = vpop.permute.xlu0 %405
        %v408 = vadd.f32 %v393, %v406
        %v409 = vld [vmem:[#allocation6 + $0x8] sm:$0x1]
        %v410 = vlaneseq
        %v411 = vshrl.u32 %v410, 7
        %v412 = vsub.s32 0, %v411
        %v413 = vrot.slane %v409, %v412
        %415 = vrot.lane.b32.xlu0 %v413, 8
        %v416 = vpop.permute.xlu0 %415
        %v418 = vmul.f32 %v386, %v416
        %420 = vrot.lane.b32.xlu0 %v418, 120
        %v421 = vpop.permute.xlu0 %420
        %v423 = vadd.f32 %v408, %v421
        %v424 = vld [vmem:[%s2] sm:$0x1]
        %v426 = vlaneseq
        %v427 = vshrl.u32 %v426, 7
        %v428 = vsub.s32 0, %v427
        %v429 = vrot.slane %v424, %v428
        %v431 = vadd.f32 %v423, %v429
        %v432 = vmax.f32 %v431, 0.0
        %v433 = vld [vmem:[#allocation8] sm:$0xff]
        %v434 = vld [vmem:[#allocation8 + $0x8] sm:$0xff]
        %v435 = vld [vmem:[#allocation8 + $0x10] sm:$0xff]
        %v436 = vld [vmem:[#allocation8 + $0x18] sm:$0xff]
        %v437 = vld [vmem:[#allocation8 + $0x20] sm:$0xff]
        %v438 = vld [vmem:[#allocation8 + $0x28] sm:$0xff]
        %v439 = vld [vmem:[#allocation8 + $0x30] sm:$0xff]
        %v440 = vld [vmem:[#allocation8 + $0x38] sm:$0xff]
        %v441 = vld [vmem:[%s4] sm:$0x1]
        %v443 = vlaneseq
        %v444 = vshrl.u32 %v443, 7
        %v445 = vsub.s32 0, %v444
        %v446 = vrot.slane %v441, %v445
        %vm448 = vcmask 523264
        %v450 = vsel %vm448, %v432, 0
        %452 = vmatprep.subr.mxu0 0.0
        %453 = vmatpush1.msra.mxu0 %v433
        %454 = vmatprep.subr.mxu0 0.0
        %455 = vmatpush1.msra.mxu0 %v434
        %456 = vmatprep.subr.mxu0 0.0
        %457 = vmatpush1.msra.mxu0 %v435
        %458 = vmatprep.subr.mxu0 0.0
        %459 = vmatpush1.msra.mxu0 %v436
        %460 = vmatprep.subr.mxu0 0.0
        %461 = vmatpush1.msra.mxu0 %v437
        %462 = vmatprep.subr.mxu0 0.0
        %463 = vmatpush1.msra.mxu0 %v438
        %464 = vmatprep.subr.mxu0 0.0
        %465 = vmatpush1.msra.mxu0 %v439
        %466 = vmatprep.subr.mxu0 0.0
        %467 = vmatpush1.msra.mxu0 %v440
        %468 = vmatprep.subr.mxu0 0.0
        %469 = vmatpush1.msra.mxu0 0.0
        %470 = vmatprep.subr.mxu0 0.0
        %471 = vmatpush1.msra.mxu0 0.0
        %472 = vmatprep.subr.mxu0 0.0
        %473 = vmatpush1.msra.mxu0 0.0
        %474 = vmatprep.subr.mxu0 0.0
        %475 = vmatpush1.msra.mxu0 0.0
        %476 = vmatprep.subr.mxu0 0.0
        %477 = vmatpush1.msra.mxu0 0.0
        %478 = vmatprep.subr.mxu0 0.0
        %479 = vmatpush1.msra.mxu0 0.0
        %480 = vmatprep.subr.mxu0 0.0
        %481 = vmatpush1.msra.mxu0 0.0
        %482 = vmatprep.subr.mxu0 0.0
        %483 = vmatpush1.msra.mxu0 0.0
        %484 = vmatprep.subr.mxu0 0.0
        %485 = vmatpush1.msra.mxu0 0.0
        %486 = vmatprep.subr.mxu0 0.0
        %487 = vmatpush1.msra.mxu0 0.0
        %488 = vmatprep.subr.mxu0 0.0
        %489 = vmatpush1.msra.mxu0 0.0
        %490 = vmatprep.subr.mxu0 0.0
        %491 = vmatpush1.msra.mxu0 0.0
        %492 = vmatprep.subr.mxu0 0.0
        %493 = vmatpush1.msra.mxu0 0.0
        %494 = vmatprep.subr.mxu0 0.0
        %495 = vmatpush1.msra.mxu0 0.0
        %496 = vmatprep.subr.mxu0 0.0
        %497 = vmatpush1.msra.mxu0 0.0
        %498 = vmatprep.subr.mxu0 0.0
        %499 = vmatpush1.msra.mxu0 0.0
        %500 = vmatprep.subr.mxu0 0.0
        %501 = vmatpush1.msra.mxu0 0.0
        %502 = vmatprep.subr.mxu0 0.0
        %503 = vmatpush1.msra.mxu0 0.0
        %504 = vmatprep.subr.mxu0 0.0
        %505 = vmatpush1.msra.mxu0 0.0
        %506 = vmatprep.subr.mxu0 0.0
        %507 = vmatpush1.msra.mxu0 0.0
        %508 = vmatprep.subr.mxu0 0.0
        %509 = vmatpush1.msra.mxu0 0.0
        %510 = vmatprep.subr.mxu0 0.0
        %511 = vmatpush1.msra.mxu0 0.0
        %512 = vmatprep.subr.mxu0 0.0
        %513 = vmatpush1.msra.mxu0 0.0
        %514 = vmatprep.subr.mxu0 0.0
        %515 = vmatpush1.msra.mxu0 0.0
        %516 = vmatprep.mubr.f32.mxu0 0.0
        %517 = vmatmul.mubr.f32.gmra.mrb[0].mxu0 %v450
        %v518 = vpop.f32.mrb[0].mxu0
        %v519 = vadd.f32 %v446, %v518
        %v520 = vpop.f32.mrb[0].mxu0
        %521 = vdwg.mxu0
        %v522 = vmax.f32 %v519, 0.0
        %523 = vst [vmem:[%s285] sm:$0xff] %v522
        %s524 = sand.u32 %s155, 1
        %s525 = scalar_lea.sflag [#allocation5], %s524
        %s526 = sand.u32 %s155, 1
        %s527 = smul.addr %s526, 8
        %s528 = scalar_lea.vmem [#allocation9], %s527
        // Predicated region
        $region53: #{tpu_custom_call.1} parent=39 // pred_check
          %p529 = pneg %p165
        $region54: #{tpu_custom_call.1} parent=39 // pred_check_branch
          %531 = sbr.rel (%p529) target = $region56
        $region55: #{tpu_custom_call.1} parent=39 // pred_region
          %s533 = ssub.s32 128, 128
          %534 = vsyncadd %s525, %s533
          %s535 = smul.addr %s27, 2
          %s536 = sadd.s32 %s28, %s535
          %s537 = smul.addr %s536, 128
          %s538 = scalar_lea.hbm %s5, %s537
          %s540 = sshll.u32 %s528, 4
          %s541 = int_to_ptr.vmem [resolvable:$true] %s540
          %543 = dma.vmem_to_hbm [thread:$0]  %s541, 128, %s538, %s525
        $region56: #{tpu_custom_call.1} parent=39 // pred_fallthru
          _
      $region40: #{tpu_custom_call.1} parent=5 // pred_fallthru
        _
      %p544 = scmp.le.s32.totalorder 2, %s18
      // Predicated region
      $region57: #{tpu_custom_call.1} parent=5 // pred_check
        %p545 = pneg %p544
      $region58: #{tpu_custom_call.1} parent=5 // pred_check_branch
        %547 = sbr.rel (%p545) target = $region60
      $region59: #{tpu_custom_call.1} parent=5 // pred_region
        %s548 = ssub.s32 %s18, 2
        // Predicated region
        $region61: #{tpu_custom_call.1} parent=59 // pred_check
          %p549 = pneg %p171
        $region62: #{tpu_custom_call.1} parent=59 // pred_check_branch
          %551 = sbr.rel (%p549) target = $region64
        $region63: #{tpu_custom_call.1} parent=59 // pred_region
          %s552 = sand.u32 %s156, 1
          %s553 = scalar_lea.sflag [#allocation5], %s552
          %s554 = sand.u32 %s156, 1
          %s555 = smul.addr %s554, 8
          %s556 = scalar_lea.vmem [#allocation9], %s555
          %557 = dma.done %s553, 128
        $region64: #{tpu_custom_call.1} parent=59 // pred_fallthru
          _
      $region60: #{tpu_custom_call.1} parent=5 // pred_fallthru
        _
    $region6: #{tpu_custom_call.1} parent=1 // loop_footer
      %s22 = sadd.s32 1, %s18
    $region7: #{tpu_custom_call.1} parent=1 // loop_footer_branch
      %17 = sbr.rel target = $region3
    $region8: #{tpu_custom_call.1} parent=1 // loop_exit
      _
    %558 = vsyncpa [#allocation4], 1
    %s559 = scalar_lea.sflag [#allocation4], 1
    %560 = vsyncpa %s559, 1
    %561 = vsyncpa [#allocation7], 1
    %562 = vsyncpa [#allocation5], 1
    %s563 = scalar_lea.sflag [#allocation5], 1
    %564 = vsyncpa %s563, 1

</llo_original>
